<compile_context>
chip_gen: v7x
topology: tpu7x:2x2x1
jax: 0.10.0
libtpu: 0.0.40
codegen_flags: <defaults>
</compile_context>

<pallas_src>
import functools

import jax
import jax.numpy as jnp
from jax.experimental import pallas as pl
from jax.experimental.pallas import tpu as pltpu


def _round_up(x, m):
    return ((x + m - 1) // m) * m


# ----------------------------- Pallas kernel ---------------------------------
def _conv_lrelu_kernel(main_ref, halo_ref, w_ref, b_ref, o_ref, patch_ref, *, ow):
    # main_ref : (M, C4P)          flat space-to-depth rows of this tile (bf16)
    # halo_ref : (8*(OW+1), C4P)   next 8 flat rows (halo for the dh/dw=1 taps) (bf16)
    # w_ref    : (4*C4P, COUT_P)   spectral-normalized weight, taps stacked along K (bf16)
    # b_ref    : (1, COUT_P)       bias (f32)
    # o_ref    : (M, COUT_P)       output tile (f32)
    # patch_ref: (M, 4*C4P)        fused-K matmul operand (bf16 VMEM scratch)
    m, c4p = main_ref.shape

    # Tap (dh, dw) -> flat-row offset dh*(OW+1) + dw; assemble the fused-K operand.
    # Each tap is a contiguous leading-axis slab; rows that run past the main block
    # come from the halo block.  Lane offsets are 128-aligned (c4p % 128 == 0).
    for i, off in enumerate((0, 1, ow + 1, ow + 2)):
        l0 = i * c4p
        if off == 0:
            patch_ref[:, l0:l0 + c4p] = main_ref[...]
        else:
            patch_ref[0:m - off, l0:l0 + c4p] = main_ref[off:m, :]
            patch_ref[m - off:m, l0:l0 + c4p] = halo_ref[0:off, :]

    # Single MXU dot over the concatenated reduction dim (K = 4*C4P), f32 accumulate.
    acc = jnp.dot(patch_ref[...], w_ref[...], preferred_element_type=jnp.float32)
    acc = acc + b_ref[...]
    o_ref[...] = jnp.where(acc >= 0.0, acc, 0.2 * acc).astype(o_ref.dtype)   # LeakyReLU(0.2)


# --------------------------- glue (plain JAX) ---------------------------------
def _l2_normalize(v, eps=1e-12):
    return v / (jnp.linalg.norm(v) + eps)


def spectral_norm_weight(w, u, n_power_iterations=1):
    """torch.nn.utils.spectral_norm forward normalization (train-mode numerics).

    w: (Cout, Cin, K, K), u: (Cout,). One power iteration (PyTorch default).
    """
    # TODO(synk): PyTorch persists the updated `u` buffer (no_grad power iteration);
    # this functional forward-only port does not return/update it.
    cout = w.shape[0]
    w_mat = w.reshape(cout, -1)
    v = None
    for _ in range(n_power_iterations):
        v = _l2_normalize(w_mat.T @ u)
        u = _l2_normalize(w_mat @ v)
    sigma = u @ (w_mat @ v)
    return w / sigma


@functools.partial(jax.jit, static_argnames=("kernel_size", "stride", "padding"))
def discriminator_block_forward(x_nchw, weight, bias, u,
                                kernel_size=4, stride=2, padding=1):
    """Forward of DiscriminatorBlock. x_nchw: (N, Cin, H, W) -> (N, Cout, OH, OW)."""
    if not (kernel_size == 4 and stride == 2 and padding == 1):
        # TODO(synk): kernel specialized to the module defaults (k=4, s=2, p=1).
        raise NotImplementedError("kernel specialized to k=4, s=2, p=1")

    N, Cin, H, W = x_nchw.shape
    Cout = weight.shape[0]
    assert H % 2 == 0 and W % 2 == 0, "H, W must be even for stride-2"
    OH, OW = H // 2, W // 2
    OW1 = OW + 1
    C4 = 4 * Cin
    C4P = _round_up(C4, 128)            # lane-dense per-tap reduction width
    COUT_P = _round_up(Cout, 128)       # lane-dense output / MXU columns

    # ---- row-tile sizing: ~2048 output positions per step, VMEM-capped, multiple of 8 ----
    per_row_bytes = 12 * C4P + 8 * COUT_P          # patch + 2x main(bf16) + 2x out(f32) per flat row
    m_cap = max(OW1, (24 << 20) // per_row_bytes)
    target_rows = max(1, min(2048, m_cap) // OW1)
    TOH = max(8, min(_round_up(OH, 8), _round_up(target_rows, 8)))
    n_t = -(-OH // TOH)                             # cdiv, no divisibility assert
    M = TOH * OW1                                   # flat output positions per step (incl. garbage col)
    HALO = 8 * OW1
    R_rows = n_t * TOH + 8                          # space-to-depth rows incl. zero pad + halo slack

    # ---- spectral norm + fused-tap weight layout: (4*C4P, COUT_P) bf16 ----
    w_bar = spectral_norm_weight(weight, u)                                    # (Cout, Cin, 4, 4)
    wt = jnp.transpose(w_bar, (2, 3, 1, 0)).reshape(2, 2, 2, 2, Cin, Cout)     # (dh, a, dw, b, ci, co)
    w2 = jnp.transpose(wt, (0, 2, 1, 3, 4, 5)).reshape(4, C4, Cout)            # (tap=2dh+dw, a*2Cin+b*Cin+ci, co)
    w2 = jnp.pad(w2, ((0, 0), (0, C4P - C4), (0, COUT_P - Cout)))
    w2 = w2.reshape(4 * C4P, COUT_P).astype(jnp.bfloat16)
    b_p = jnp.pad(bias, (0, COUT_P - Cout)).astype(jnp.float32).reshape(1, COUT_P)

    # ---- input: bf16 cast first, NCHW->NHWC, pad, space-to-depth, flatten spatial ----
    x_nhwc = jnp.transpose(x_nchw.astype(jnp.bfloat16), (0, 2, 3, 1))          # (N, H, W, Cin)
    xp = jnp.pad(x_nhwc, ((0, 0), (1, 1), (1, 1), (0, 0)))                     # (N, H+2, W+2, Cin)
    xs = xp.reshape(N, OH + 1, 2, OW1, 2, Cin)
    xs = jnp.transpose(xs, (0, 1, 3, 2, 4, 5)).reshape(N, OH + 1, OW1, C4)     # channel order (a, b, ci)
    xs = jnp.pad(xs, ((0, 0), (0, R_rows - (OH + 1)), (0, 0), (0, C4P - C4)))
    xs_flat = xs.reshape(N, R_rows * OW1, C4P)                                 # (N, R_flat, C4P)

    # ---- VMEM budget from actual buffer sizes (default double-buffering assumed) ----
    # TODO(synk): pipeline_mode=pl.Buffered(1) on the constant weight/bias specs would halve
    # their VMEM; omitted here for lowering compatibility, and accounted for in `need`.
    need = (2 * M * C4P * 2            # main tile, double-buffered, bf16
            + 2 * HALO * C4P * 2       # halo tile
            + 2 * 4 * C4P * COUT_P * 2 # weight (resident, 2 buffers allocated)
            + 2 * 8 * COUT_P * 4       # bias (sublane-padded)
            + 2 * M * COUT_P * 4       # output, f32
            + M * 4 * C4P * 2)         # fused-K patch scratch
    vmem_limit = int(min(96 << 20, max(32 << 20, (need * 13) // 10)))

    kernel = functools.partial(_conv_lrelu_kernel, ow=OW)
    toh8 = TOH // 8

    out_flat = pl.pallas_call(
        kernel,
        out_shape=jax.ShapeDtypeStruct((N, n_t * M, COUT_P), jnp.float32),
        grid_spec=pltpu.PrefetchScalarGridSpec(
            num_scalar_prefetch=0,
            grid=(N, n_t),
            in_specs=[
                # main flat-row block of this tile: rows [t*M, (t+1)*M)
                pl.BlockSpec((None, M, C4P), lambda n, t: (n, t, 0)),
                # 8-row halo: rows [(t+1)*M, (t+1)*M + 8*(OW+1)) from the same array
                pl.BlockSpec((None, HALO, C4P), lambda n, t: (n, (t + 1) * toh8, 0)),
                # fused weight, resident (constant index map)
                pl.BlockSpec((4 * C4P, COUT_P), lambda n, t: (0, 0)),
                # bias
                pl.BlockSpec((1, COUT_P), lambda n, t: (0, 0)),
            ],
            out_specs=pl.BlockSpec((None, M, COUT_P), lambda n, t: (n, t, 0)),
            scratch_shapes=[pltpu.VMEM((M, 4 * C4P), jnp.bfloat16)],
        ),
        compiler_params=pltpu.CompilerParams(
            dimension_semantics=("parallel", "parallel"),
            vmem_limit_bytes=vmem_limit,
        ),
    )(xs_flat, xs_flat, w2, b_p)

    # drop garbage column (ow == OW), padded rows, padded Cout; back to NCHW f32.
    out = out_flat.reshape(N, n_t * TOH, OW1, COUT_P)[:, :OH, :OW, :Cout]
    # TODO(synk): when stacking blocks, emit bf16 NHWC (+padded Cout) end-to-end and skip
    # this slice/transpose + f32 cast to cut output-side HBM traffic further.
    return jnp.transpose(out, (0, 3, 1, 2)).astype(x_nchw.dtype)


# --------------------------- reference (for check) ----------------------------
def _reference(x_nchw, weight, bias, u, stride=2, padding=1):
    w_bar = spectral_norm_weight(weight, u)
    y = jax.lax.conv_general_dilated(
        x_nchw, w_bar, window_strides=(stride, stride),
        padding=((padding, padding), (padding, padding)),
        dimension_numbers=("NCHW", "OIHW", "NCHW"))
    y = y + bias[None, :, None, None]
    return jnp.where(y >= 0.0, y, 0.2 * y)


if __name__ == "__main__":
    key = jax.random.PRNGKey(0)
    k_x, k_w, k_b, k_u = jax.random.split(key, 4)

    N, Cin, H, W = 2, 4, 16, 16
    Cout, K, S, P = 8, 4, 2, 1

    x = jax.random.normal(k_x, (N, Cin, H, W), dtype=jnp.float32)
    # Deterministic parameter init (stand-in for PyTorch kaiming-uniform).
    fan_in = Cin * K * K
    bound = 1.0 / jnp.sqrt(fan_in)
    weight = jax.random.uniform(k_w, (Cout, Cin, K, K), minval=-bound, maxval=bound,
                                dtype=jnp.float32)
    bias = jax.random.uniform(k_b, (Cout,), minval=-bound, maxval=bound,
                              dtype=jnp.float32)
    # Spectral-norm power-iteration vector u (PyTorch stores a random-normal u).
    u = _l2_normalize(jax.random.normal(k_u, (Cout,), dtype=jnp.float32))

    out = discriminator_block_forward(x, weight, bias, u,
                                      kernel_size=K, stride=S, padding=P)
    out = jax.block_until_ready(out)

    ref = _reference(x, weight, bias, u, stride=S, padding=P)
    assert out.shape == (N, Cout, H // S, W // S), out.shape
    # bf16 matmul inputs with f32 accumulation -> loosened tolerance vs f32 reference.
    max_err = float(jnp.max(jnp.abs(out - ref)))
    assert max_err < 5e-2, max_err

    print("KERNEL_OK")
</pallas_src>

<mosaic_0001>
module attributes {stable_mosaic.version = 11 : i64} {
  func.func @_conv_lrelu_kernel(%arg0: i32, %arg1: i32, %arg2: memref<1x72x128xbf16, #tpu.memory_space<vmem>>, %arg3: memref<1x72x128xbf16, #tpu.memory_space<vmem>>, %arg4: memref<512x128xbf16, #tpu.memory_space<vmem>>, %arg5: memref<1x128xf32, #tpu.memory_space<vmem>>, %arg6: memref<1x72x128xf32, #tpu.memory_space<vmem>>, %arg7: memref<72x512xbf16, #tpu.memory_space<vmem>>) attributes {dimension_semantics = [#tpu.dimension_semantics<parallel>, #tpu.dimension_semantics<parallel>], iteration_bounds = array<i64: 2, 1>, scalar_prefetch = 0 : i64, scratch_operands = 1 : i64, tpu.core_type = #tpu.core_type<tc>, window_params = [{transform_indices = @transform_0, window_bounds = array<i64: 1, 72, 128>}, {transform_indices = @transform_1, window_bounds = array<i64: 1, 72, 128>}, {pipeline_mode = #tpu.pipeline_mode<synchronous>, transform_indices = @transform_2, window_bounds = array<i64: 512, 128>}, {pipeline_mode = #tpu.pipeline_mode<synchronous>, transform_indices = @transform_3, window_bounds = array<i64: 1, 128>}, {transform_indices = @transform_4, window_bounds = array<i64: 1, 72, 128>}]} {
    %c0 = arith.constant 0 : index
    %c0_0 = arith.constant 0 : index
    %c0_1 = arith.constant 0 : index
    %0 = vector.load %arg2[%c0, %c0_0, %c0_1] : memref<1x72x128xbf16, #tpu.memory_space<vmem>>, vector<1x72x128xbf16>
    %1 = vector.shape_cast %0 : vector<1x72x128xbf16> to vector<72x128xbf16>
    %c0_2 = arith.constant 0 : index
    %c0_3 = arith.constant 0 : index
    %2 = vector.load %arg7[%c0_2, %c0_3] : memref<72x512xbf16, #tpu.memory_space<vmem>>, vector<72x128xbf16>
    tpu.vector_store %arg7[%c0_2, %c0_3], %1 {strides = array<i32>} : memref<72x512xbf16, #tpu.memory_space<vmem>>, vector<72x128xbf16>,
    %c0_4 = arith.constant 0 : index
    %c1 = arith.constant 1 : index
    %c0_5 = arith.constant 0 : index
    %3 = vector.load %arg2[%c0_4, %c1, %c0_5] : memref<1x72x128xbf16, #tpu.memory_space<vmem>>, vector<1x71x128xbf16>
    %4 = vector.shape_cast %3 : vector<1x71x128xbf16> to vector<71x128xbf16>
    %c0_6 = arith.constant 0 : index
    %c128 = arith.constant 128 : index
    %5 = vector.load %arg7[%c0_6, %c128] : memref<72x512xbf16, #tpu.memory_space<vmem>>, vector<71x128xbf16>
    tpu.vector_store %arg7[%c0_6, %c128], %4 {strides = array<i32>} : memref<72x512xbf16, #tpu.memory_space<vmem>>, vector<71x128xbf16>,
    %c0_7 = arith.constant 0 : index
    %c0_8 = arith.constant 0 : index
    %c0_9 = arith.constant 0 : index
    %6 = vector.load %arg3[%c0_7, %c0_8, %c0_9] : memref<1x72x128xbf16, #tpu.memory_space<vmem>>, vector<1x1x128xbf16>
    %7 = vector.shape_cast %6 : vector<1x1x128xbf16> to vector<1x128xbf16>
    %c71 = arith.constant 71 : index
    %c128_10 = arith.constant 128 : index
    %8 = vector.load %arg7[%c71, %c128_10] : memref<72x512xbf16, #tpu.memory_space<vmem>>, vector<1x128xbf16>
    tpu.vector_store %arg7[%c71, %c128_10], %7 {strides = array<i32>} : memref<72x512xbf16, #tpu.memory_space<vmem>>, vector<1x128xbf16>,
    %c0_11 = arith.constant 0 : index
    %c9 = arith.constant 9 : index
    %c0_12 = arith.constant 0 : index
    %9 = vector.load %arg2[%c0_11, %c9, %c0_12] : memref<1x72x128xbf16, #tpu.memory_space<vmem>>, vector<1x63x128xbf16>
    %10 = vector.shape_cast %9 : vector<1x63x128xbf16> to vector<63x128xbf16>
    %c0_13 = arith.constant 0 : index
    %c256 = arith.constant 256 : index
    %11 = vector.load %arg7[%c0_13, %c256] : memref<72x512xbf16, #tpu.memory_space<vmem>>, vector<63x128xbf16>
    tpu.vector_store %arg7[%c0_13, %c256], %10 {strides = array<i32>} : memref<72x512xbf16, #tpu.memory_space<vmem>>, vector<63x128xbf16>,
    %c0_14 = arith.constant 0 : index
    %c0_15 = arith.constant 0 : index
    %c0_16 = arith.constant 0 : index
    %12 = vector.load %arg3[%c0_14, %c0_15, %c0_16] : memref<1x72x128xbf16, #tpu.memory_space<vmem>>, vector<1x9x128xbf16>
    %13 = vector.shape_cast %12 : vector<1x9x128xbf16> to vector<9x128xbf16>
    %c63 = arith.constant 63 : index
    %c256_17 = arith.constant 256 : index
    %14 = vector.load %arg7[%c63, %c256_17] : memref<72x512xbf16, #tpu.memory_space<vmem>>, vector<9x128xbf16>
    tpu.vector_store %arg7[%c63, %c256_17], %13 {strides = array<i32>} : memref<72x512xbf16, #tpu.memory_space<vmem>>, vector<9x128xbf16>,
    %c0_18 = arith.constant 0 : index
    %c10 = arith.constant 10 : index
    %c0_19 = arith.constant 0 : index
    %15 = vector.load %arg2[%c0_18, %c10, %c0_19] : memref<1x72x128xbf16, #tpu.memory_space<vmem>>, vector<1x62x128xbf16>
    %16 = vector.shape_cast %15 : vector<1x62x128xbf16> to vector<62x128xbf16>
    %c0_20 = arith.constant 0 : index
    %c384 = arith.constant 384 : index
    %17 = vector.load %arg7[%c0_20, %c384] : memref<72x512xbf16, #tpu.memory_space<vmem>>, vector<62x128xbf16>
    tpu.vector_store %arg7[%c0_20, %c384], %16 {strides = array<i32>} : memref<72x512xbf16, #tpu.memory_space<vmem>>, vector<62x128xbf16>,
    %c0_21 = arith.constant 0 : index
    %c0_22 = arith.constant 0 : index
    %c0_23 = arith.constant 0 : index
    %18 = vector.load %arg3[%c0_21, %c0_22, %c0_23] : memref<1x72x128xbf16, #tpu.memory_space<vmem>>, vector<1x10x128xbf16>
    %19 = vector.shape_cast %18 : vector<1x10x128xbf16> to vector<10x128xbf16>
    %c62 = arith.constant 62 : index
    %c384_24 = arith.constant 384 : index
    %20 = vector.load %arg7[%c62, %c384_24] : memref<72x512xbf16, #tpu.memory_space<vmem>>, vector<10x128xbf16>
    tpu.vector_store %arg7[%c62, %c384_24], %19 {strides = array<i32>} : memref<72x512xbf16, #tpu.memory_space<vmem>>, vector<10x128xbf16>,
    %c0_25 = arith.constant 0 : index
    %c0_26 = arith.constant 0 : index
    %21 = vector.load %arg7[%c0_25, %c0_26] : memref<72x512xbf16, #tpu.memory_space<vmem>>, vector<72x512xbf16>
    %c0_27 = arith.constant 0 : index
    %c0_28 = arith.constant 0 : index
    %22 = vector.load %arg4[%c0_27, %c0_28] : memref<512x128xbf16, #tpu.memory_space<vmem>>, vector<512x128xbf16>
    %cst = arith.constant dense<0.000000e+00> : vector<72x128xf32>
    %23 = tpu.matmul %21, %22, %cst {dimension_numbers = #tpu.dot_dimension_numbers<[1], [0], [0], [1], [0, 0, 1, 1], [], []>} : vector<72x512xbf16>, vector<512x128xbf16>, vector<72x128xf32> -> vector<72x128xf32>
    %c0_29 = arith.constant 0 : index
    %c0_30 = arith.constant 0 : index
    %24 = vector.load %arg5[%c0_29, %c0_30] : memref<1x128xf32, #tpu.memory_space<vmem>>, vector<1x128xf32>
    %25 = vector.broadcast %24 : vector<1x128xf32> to vector<72x128xf32>
    %26 = arith.addf %23, %25 : vector<72x128xf32>
    %cst_31 = arith.constant 0.000000e+00 : f32
    %27 = vector.broadcast %cst_31 : f32 to vector<72x128xf32>
    %28 = arith.cmpf oge, %26, %27 : vector<72x128xf32>
    %cst_32 = arith.constant 2.000000e-01 : f32
    %29 = vector.broadcast %cst_32 : f32 to vector<72x128xf32>
    %30 = arith.mulf %29, %26 : vector<72x128xf32>
    %31 = arith.select %28, %26, %30 : vector<72x128xi1>, vector<72x128xf32>
    %c0_33 = arith.constant 0 : index
    %c0_34 = arith.constant 0 : index
    %c0_35 = arith.constant 0 : index
    %32 = vector.load %arg6[%c0_33, %c0_34, %c0_35] : memref<1x72x128xf32, #tpu.memory_space<vmem>>, vector<1x72x128xf32>
    %33 = vector.shape_cast %32 : vector<1x72x128xf32> to vector<72x128xf32>
    %34 = vector.shape_cast %31 : vector<72x128xf32> to vector<1x72x128xf32>
    tpu.vector_store %arg6[%c0_33, %c0_34, %c0_35], %34 {strides = array<i32>} : memref<1x72x128xf32, #tpu.memory_space<vmem>>, vector<1x72x128xf32>,
    return
  }
  func.func @transform_0(%arg0: i32, %arg1: i32) -> (i32, i32, i32) {
    %c0_i32 = arith.constant 0 : i32
    %c0_i32_0 = arith.constant 0 : i32
    return %arg0, %arg1, %c0_i32 : i32, i32, i32
  }
  func.func @transform_1(%arg0: i32, %arg1: i32) -> (i32, i32, i32) {
    %c1_i32 = arith.constant 1 : i32
    %0 = arith.addi %arg1, %c1_i32 : i32
    %c1_i32_0 = arith.constant 1 : i32
    %1 = arith.muli %0, %c1_i32_0 : i32
    %c0_i32 = arith.constant 0 : i32
    %c0_i32_1 = arith.constant 0 : i32
    return %arg0, %1, %c0_i32 : i32, i32, i32
  }
  func.func @transform_2(%arg0: i32, %arg1: i32) -> (i32, i32) {
    %c0_i32 = arith.constant 0 : i32
    %c0_i32_0 = arith.constant 0 : i32
    %c0_i32_1 = arith.constant 0 : i32
    return %c0_i32, %c0_i32_0 : i32, i32
  }
  func.func @transform_3(%arg0: i32, %arg1: i32) -> (i32, i32) {
    %c0_i32 = arith.constant 0 : i32
    %c0_i32_0 = arith.constant 0 : i32
    %c0_i32_1 = arith.constant 0 : i32
    return %c0_i32, %c0_i32_0 : i32, i32
  }
  func.func @transform_4(%arg0: i32, %arg1: i32) -> (i32, i32, i32) {
    %c0_i32 = arith.constant 0 : i32
    %c0_i32_0 = arith.constant 0 : i32
    return %arg0, %arg1, %c0_i32 : i32, i32, i32
  }
}

</mosaic_0001>

<llo_original>
// kernel: discriminator_block_forward.1
$region0: #{discriminator_block_forward.1}
  #allocation0 [shape = 'u32[]', space=smem, size = 0x4, offset = 0x4, fixed_abs, tag = 'smem constant byte address 0x4 - core index']
  #allocation1 [shape = 'u32[144,128]{1,0:T(1,128)}', space=vmem, size = 0x12000, scoped, tag = 'internal scratch']
  #allocation2 [shape = 'bf16[72,512]{1,0:T(8,128)(2,1)}', space=vmem, size = 0x12000, scoped, tag = 'scratch operand']
  %s0 = inlined_call_operand.vmem [shape: bf16[2,144,128], index: 0, kind: input, shape index: {}, may-alias: {0,1}]
  %s1 = inlined_call_operand.vmem [shape: bf16[2,144,128], index: 1, kind: input, shape index: {}, may-alias: {0,1}]
  %s2 = inlined_call_operand.vmem [shape: bf16[512,128], index: 2, kind: input, shape index: {}]
  %s3 = inlined_call_operand.vmem [shape: f32[1,128], index: 3, kind: input, shape index: {}]
  %s4 = inlined_call_operand.vmem [shape: f32[2,72,128], index: 4, kind: output, shape index: {}]
  %s5 = sld [smem:[#allocation0]]
  $region49: #{discriminator_block_forward.1} parent=0
    _
  %s7 = ssub.s32 1, %s5
  %s8 = scalar_select 0, %s7, %s5
  loop: start=0, step=1, limit=4
  $region2: #{discriminator_block_forward.1} parent=0 // loop_pre_header
    _
  $region3: #{discriminator_block_forward.1} parent=0 // loop_header
    %s10 = sphi 0, %s14
    %p11 = scmp.ge.s32.totalorder %s10, 4
    %s17 = sphi 0, %s29
    %s18 = sphi 0, %s25
    %s19 = sphi 0, %s17
    %s20 = sphi 0, %s18
    %s21 = sphi 0, %s19
    %s22 = sphi 0, %s20
    %s34 = sphi 0, %s36
    %s37 = sphi 0, %s34
    %s38 = sphi 0, %s37
    %s54 = sphi 0, %s38
    %s64 = sphi 0, %s66
    %s67 = sphi 0, %s64
    %s68 = sphi 0, %s67
    %s84 = sphi 0, %s68
    %s88 = sphi 0, %s88
    %s90 = sphi 0, %s88
    %s91 = sphi 0, %s90
    %s105 = sphi 0, %s91
    %s109 = sphi 0, %s109
    %s111 = sphi 0, %s109
    %s112 = sphi 0, %s111
    %s126 = sphi 0, %s112
    %s134 = sphi 0, %s136
    %s137 = sphi 0, %s134
    %s138 = sphi 0, %s137
    %s154 = sphi 0, %s138
  $region4: #{discriminator_block_forward.1} parent=0 // loop_header_branch
    %13 = sbr.rel (%p11) target = $region8
  $region5: #{discriminator_block_forward.1} parent=0 // loop_body
    %s15 = ssub.s32 %s10, 1
    %s16 = ssub.s32 %s10, 2
    %s23 = sadd.s32 1, %s18
    %p24 = scmp.ge.s32.totalorder %s23, 1
    %s25 = scalar_select %p24, 0, %s23
    %s26 = sadd.s32 1, %s17
    %s27 = scalar_select %p24, %s26, %s17
    %p28 = scmp.ge.s32.totalorder %s27, 2
    %s29 = scalar_select %p28, 0, %s27
    %s30 = ssub.s32 %s17, %s29
    %s31 = ssub.s32 %s18, %s25
    %s32 = sor.u32 %s30, %s31
    %p33 = scmp.eq.s32.totalorder %s32, 0
    %s35 = sadd.s32 %s34, 1
    %s36 = scalar_select %p33, %s34, %s35
    %p39 = pneg %p33
    %p40 = scmp.eq.s32.totalorder %s10, 1
    %p41 = por %p39, %p40
    %p42 = scmp.ne.s32.totalorder %s34, %s37
    %p43 = scmp.eq.s32.totalorder %s10, 0
    %p44 = por %p42, %p43
    %p45 = scmp.ne.s32.totalorder %s34, %s37
    %p46 = scmp.eq.s32.totalorder %s15, 1
    %p47 = por %p45, %p46
    %p48 = scmp.ne.s32.totalorder %s37, %s38
    %p49 = scmp.eq.s32.totalorder %s15, 0
    %p50 = por %p48, %p49
    %p51 = scmp.ne.s32.totalorder %s37, %s38
    %p52 = scmp.eq.s32.totalorder %s16, 1
    %p53 = por %p51, %p52
    %p55 = scmp.ne.s32.totalorder %s38, %s54
    %p56 = scmp.eq.s32.totalorder %s16, 0
    %p57 = por %p55, %p56
    %s58 = sadd.s32 %s18, 1
    %s59 = sadd.s32 %s25, 1
    %s60 = ssub.s32 %s17, %s29
    %s61 = ssub.s32 %s58, %s59
    %s62 = sor.u32 %s60, %s61
    %p63 = scmp.eq.s32.totalorder %s62, 0
    %s65 = sadd.s32 %s64, 1
    %s66 = scalar_select %p63, %s64, %s65
    %p69 = pneg %p63
    %p70 = scmp.eq.s32.totalorder %s10, 1
    %p71 = por %p69, %p70
    %p72 = scmp.ne.s32.totalorder %s64, %s67
    %p73 = scmp.eq.s32.totalorder %s10, 0
    %p74 = por %p72, %p73
    %p75 = scmp.ne.s32.totalorder %s64, %s67
    %p76 = scmp.eq.s32.totalorder %s15, 1
    %p77 = por %p75, %p76
    %p78 = scmp.ne.s32.totalorder %s67, %s68
    %p79 = scmp.eq.s32.totalorder %s15, 0
    %p80 = por %p78, %p79
    %p81 = scmp.ne.s32.totalorder %s67, %s68
    %p82 = scmp.eq.s32.totalorder %s16, 1
    %p83 = por %p81, %p82
    %p85 = scmp.ne.s32.totalorder %s68, %s84
    %p86 = scmp.eq.s32.totalorder %s16, 0
    %p87 = por %p85, %p86
    %s89 = sadd.s32 %s88, 1
    %p92 = scmp.eq.s32.totalorder %s10, 1
    %p93 = scmp.ne.s32.totalorder %s88, %s90
    %p94 = scmp.eq.s32.totalorder %s10, 0
    %p95 = por %p93, %p94
    %p96 = scmp.ne.s32.totalorder %s88, %s90
    %p97 = scmp.eq.s32.totalorder %s15, 1
    %p98 = por %p96, %p97
    %p99 = scmp.ne.s32.totalorder %s90, %s91
    %p100 = scmp.eq.s32.totalorder %s15, 0
    %p101 = por %p99, %p100
    %p102 = scmp.ne.s32.totalorder %s90, %s91
    %p103 = scmp.eq.s32.totalorder %s16, 1
    %p104 = por %p102, %p103
    %p106 = scmp.ne.s32.totalorder %s91, %s105
    %p107 = scmp.eq.s32.totalorder %s16, 0
    %p108 = por %p106, %p107
    %s110 = sadd.s32 %s109, 1
    %p113 = scmp.eq.s32.totalorder %s10, 1
    %p114 = scmp.ne.s32.totalorder %s109, %s111
    %p115 = scmp.eq.s32.totalorder %s10, 0
    %p116 = por %p114, %p115
    %p117 = scmp.ne.s32.totalorder %s109, %s111
    %p118 = scmp.eq.s32.totalorder %s15, 1
    %p119 = por %p117, %p118
    %p120 = scmp.ne.s32.totalorder %s111, %s112
    %p121 = scmp.eq.s32.totalorder %s15, 0
    %p122 = por %p120, %p121
    %p123 = scmp.ne.s32.totalorder %s111, %s112
    %p124 = scmp.eq.s32.totalorder %s16, 1
    %p125 = por %p123, %p124
    %p127 = scmp.ne.s32.totalorder %s112, %s126
    %p128 = scmp.eq.s32.totalorder %s16, 0
    %p129 = por %p127, %p128
    %s130 = ssub.s32 %s17, %s29
    %s131 = ssub.s32 %s18, %s25
    %s132 = sor.u32 %s130, %s131
    %p133 = scmp.eq.s32.totalorder %s132, 0
    %s135 = sadd.s32 %s134, 1
    %s136 = scalar_select %p133, %s134, %s135
    %p139 = pneg %p133
    %p140 = scmp.eq.s32.totalorder %s10, 1
    %p141 = por %p139, %p140
    %p142 = scmp.ne.s32.totalorder %s134, %s137
    %p143 = scmp.eq.s32.totalorder %s10, 0
    %p144 = por %p142, %p143
    %p145 = scmp.ne.s32.totalorder %s134, %s137
    %p146 = scmp.eq.s32.totalorder %s15, 1
    %p147 = por %p145, %p146
    %p148 = scmp.ne.s32.totalorder %s137, %s138
    %p149 = scmp.eq.s32.totalorder %s15, 0
    %p150 = por %p148, %p149
    %p151 = scmp.ne.s32.totalorder %s137, %s138
    %p152 = scmp.eq.s32.totalorder %s16, 1
    %p153 = por %p151, %p152
    %p155 = scmp.ne.s32.totalorder %s138, %s154
    %p156 = scmp.eq.s32.totalorder %s16, 0
    %p157 = por %p155, %p156
    %p158 = scmp.le.s32.totalorder 1, %s10
    %p159 = scmp.lt.s32.totalorder %s10, 3
    %p160 = pnand %p158, %p159
    %p161 = pneg %p160
    // Predicated region
    $region9: #{discriminator_block_forward.1} parent=5 // pred_check
      _
    $region10: #{discriminator_block_forward.1} parent=5 // pred_check_branch
      %163 = sbr.rel (%p160) target = $region12
    $region11: #{discriminator_block_forward.1} parent=5 // pred_region
      %s164 = ssub.s32 %s10, 1
      // Predicated region
      $region13: #{discriminator_block_forward.1} parent=11 // pred_check
        %p165 = pneg %p101
      $region14: #{discriminator_block_forward.1} parent=11 // pred_check_branch
        %167 = sbr.rel (%p165) target = $region16
      $region15: #{discriminator_block_forward.1} parent=11 // pred_region
        _
      $region16: #{discriminator_block_forward.1} parent=11 // pred_fallthru
        _
      // Predicated region
      $region17: #{discriminator_block_forward.1} parent=11 // pred_check
        %p168 = pneg %p122
      $region18: #{discriminator_block_forward.1} parent=11 // pred_check_branch
        %170 = sbr.rel (%p168) target = $region20
      $region19: #{discriminator_block_forward.1} parent=11 // pred_region
        _
      $region20: #{discriminator_block_forward.1} parent=11 // pred_fallthru
        _
    $region12: #{discriminator_block_forward.1} parent=5 // pred_fallthru
      _
    %p171 = scmp.lt.s32.totalorder %s10, 2
    // Predicated region
    $region21: #{discriminator_block_forward.1} parent=5 // pred_check
      %p172 = pneg %p171
    $region22: #{discriminator_block_forward.1} parent=5 // pred_check_branch
      %174 = sbr.rel (%p172) target = $region24
    $region23: #{discriminator_block_forward.1} parent=5 // pred_region
      // Predicated region
      $region25: #{discriminator_block_forward.1} parent=23 // pred_check
        %p175 = pneg %p44
      $region26: #{discriminator_block_forward.1} parent=23 // pred_check_branch
        %177 = sbr.rel (%p175) target = $region28
      $region27: #{discriminator_block_forward.1} parent=23 // pred_region
        %s178 = smul.u32 9, %s18
        %p179 = scmp.lt.s32.totalorder %s17, 1
        %s180 = scalar_select %p179, %s17, 1
        %p181 = scmp.lt.s32.totalorder %s178, 17
        %s182 = scalar_select %p181, %s178, 17
        %s183 = smul.addr %s180, 18
        %s184 = sadd.s32 %s182, %s183
        %s185 = smul.addr %s184, 4
        %s186 = scalar_lea.vmem %s0, %s185
        %s187 = smul.u32 9, %s18
      $region28: #{discriminator_block_forward.1} parent=23 // pred_fallthru
        _
      // Predicated region
      $region29: #{discriminator_block_forward.1} parent=23 // pred_check
        %p188 = pneg %p74
      $region30: #{discriminator_block_forward.1} parent=23 // pred_check_branch
        %190 = sbr.rel (%p188) target = $region32
      $region31: #{discriminator_block_forward.1} parent=23 // pred_region
        %s191 = sadd.s32 %s18, 1
        %s192 = smul.u32 9, %s191
        %p193 = scmp.lt.s32.totalorder %s17, 1
        %s194 = scalar_select %p193, %s17, 1
        %p195 = scmp.lt.s32.totalorder %s192, 17
        %s196 = scalar_select %p195, %s192, 17
        %s197 = smul.addr %s194, 18
        %s198 = sadd.s32 %s196, %s197
        %s199 = smul.addr %s198, 4
        %s200 = scalar_lea.vmem %s1, %s199
        %s201 = sadd.s32 %s18, 1
        %s202 = smul.u32 9, %s201
      $region32: #{discriminator_block_forward.1} parent=23 // pred_fallthru
        _
    $region24: #{discriminator_block_forward.1} parent=5 // pred_fallthru
      _
    %p203 = scmp.le.s32.totalorder 1, %s10
    %p204 = scmp.lt.s32.totalorder %s10, 3
    %p205 = pnand %p203, %p204
    %p206 = pneg %p205
    // Predicated region
    $region33: #{discriminator_block_forward.1} parent=5 // pred_check
      _
    $region34: #{discriminator_block_forward.1} parent=5 // pred_check_branch
      %208 = sbr.rel (%p205) target = $region36
    $region35: #{discriminator_block_forward.1} parent=5 // pred_region
      %s209 = ssub.s32 %s10, 1
      %s210 = smul.u32 9, %s20
      %p211 = scmp.lt.s32.totalorder %s19, 1
      %s212 = scalar_select %p211, %s19, 1
      %p213 = scmp.lt.s32.totalorder %s210, 17
      %s214 = scalar_select %p213, %s210, 17
      %s215 = smul.addr %s212, 18
      %s216 = sadd.s32 %s214, %s215
      %s217 = smul.addr %s216, 4
      %s218 = scalar_lea.vmem %s0, %s217
      %p219 = pneg %p50
      %p220 = pneg %p47
      %s221 = sadd.s32 %s20, 1
      %s222 = smul.u32 9, %s221
      %p223 = scmp.lt.s32.totalorder %s19, 1
      %s224 = scalar_select %p223, %s19, 1
      %p225 = scmp.lt.s32.totalorder %s222, 17
      %s226 = scalar_select %p225, %s222, 17
      %s227 = smul.addr %s224, 18
      %s228 = sadd.s32 %s226, %s227
      %s229 = smul.addr %s228, 4
      %s230 = scalar_lea.vmem %s1, %s229
      %p231 = pneg %p80
      %p232 = pneg %p77
      %p233 = pneg %p101
      %p234 = pneg %p98
      %p235 = pneg %p122
      %p236 = pneg %p119
      %p237 = pneg %p150
      %p238 = pneg %p147
      %s239 = smul.u32 9, %s20
      %p240 = scmp.lt.s32.totalorder %s19, 1
      %s241 = scalar_select %p240, %s19, 1
      %p242 = scmp.lt.s32.totalorder %s239, 8
      %s243 = scalar_select %p242, %s239, 8
      %s244 = smul.addr %s241, 9
      %s245 = sadd.s32 %s243, %s244
      %s246 = smul.addr %s245, 8
      %s247 = scalar_lea.vmem %s4, %s246
      %s248 = smul.u32 9, %s20
      %p249 = scmp.lt.s32.totalorder %s19, 1
      %s250 = scalar_select %p249, %s19, 1
      %p251 = scmp.lt.s32.totalorder %s248, 17
      %s252 = scalar_select %p251, %s248, 17
      %s253 = smul.addr %s250, 18
      %s254 = sadd.s32 %s252, %s253
      %s255 = smul.addr %s254, 4
      %s256 = scalar_lea.vmem %s0, %s255
      %s257 = smul.u32 9, %s20
      %s258 = sadd.s32 %s20, 1
      %s259 = smul.u32 9, %s258
      %p260 = scmp.lt.s32.totalorder %s19, 1
      %s261 = scalar_select %p260, %s19, 1
      %p262 = scmp.lt.s32.totalorder %s259, 17
      %s263 = scalar_select %p262, %s259, 17
      %s264 = smul.addr %s261, 18
      %s265 = sadd.s32 %s263, %s264
      %s266 = smul.addr %s265, 4
      %s267 = scalar_lea.vmem %s1, %s266
      %s268 = sadd.s32 %s20, 1
      %s269 = smul.u32 9, %s268
      %s270 = smul.u32 9, %s20
      %p271 = scmp.lt.s32.totalorder %s19, 1
      %s272 = scalar_select %p271, %s19, 1
      %p273 = scmp.lt.s32.totalorder %s270, 8
      %s274 = scalar_select %p273, %s270, 8
      %s275 = smul.addr %s272, 9
      %s276 = sadd.s32 %s274, %s275
      %s277 = smul.addr %s276, 8
      %s278 = scalar_lea.vmem %s4, %s277
      %s279 = smul.u32 9, %s20
      %v281 = vld [vmem:[%s256] sm:$0xf]
      %v282 = vld [vmem:[%s256 + $0x4] sm:$0xf]
      %v283 = vld [vmem:[%s256 + $0x8] sm:$0xf]
      %v284 = vld [vmem:[%s256 + $0xc] sm:$0xf]
      %v285 = vld [vmem:[%s256 + $0x10] sm:$0xf]
      %v286 = vld [vmem:[%s256 + $0x14] sm:$0xf]
      %v287 = vld [vmem:[%s256 + $0x18] sm:$0xf]
      %v288 = vld [vmem:[%s256 + $0x1c] sm:$0xf]
      %v289 = vld [vmem:[%s256 + $0x20] sm:$0xf]
      %290 = vst [vmem:[#allocation2] sm:$0xf] %v281
      %291 = vst [vmem:[#allocation2 + $0x10] sm:$0xf] %v282
      %292 = vst [vmem:[#allocation2 + $0x20] sm:$0xf] %v283
      %293 = vst [vmem:[#allocation2 + $0x30] sm:$0xf] %v284
      %294 = vst [vmem:[#allocation2 + $0x40] sm:$0xf] %v285
      %295 = vst [vmem:[#allocation2 + $0x50] sm:$0xf] %v286
      %296 = vst [vmem:[#allocation2 + $0x60] sm:$0xf] %v287
      %297 = vst [vmem:[#allocation2 + $0x70] sm:$0xf] %v288
      %298 = vst [vmem:[#allocation2 + $0x80] sm:$0xf] %v289
      %v299 = vld [vmem:[%s256] sm:$0xf]
      %v300 = vld [vmem:[%s256 + $0x4] sm:$0xf]
      %v301 = vld [vmem:[%s256 + $0x8] sm:$0xf]
      %v302 = vld [vmem:[%s256 + $0xc] sm:$0xf]
      %v303 = vld [vmem:[%s256 + $0x10] sm:$0xf]
      %v304 = vld [vmem:[%s256 + $0x14] sm:$0xf]
      %v305 = vld [vmem:[%s256 + $0x18] sm:$0xf]
      %v306 = vld [vmem:[%s256 + $0x1c] sm:$0xf]
      %v307 = vld [vmem:[%s256 + $0x20] sm:$0xf]
      %vm308 = vsmask.f32 3328
      %vm309 = vsmask.f32 7440
      %vm310 = vmor %vm308, %vm309
      %v312 = vshrl.u32 %v299, 16
      %v314 = vrot.slane %v312, 4
      %v315 = vshll.u32 %v299, 16
      %v317 = vrot.slane %v315, 5
      %v318 = vor.u32 %v314, %v317
      %v319 = vrot.slane %v318, 4
      %v321 = vshll.u32 %v300, 16
      %v323 = vrot.slane %v321, 5
      %v324 = vsel %vm310, %v319, %v323
      %v325 = vshrl.u32 %v300, 16
      %v327 = vrot.slane %v325, 4
      %v328 = vor.u32 %v327, %v323
      %v329 = vrot.slane %v328, 4
      %v331 = vshll.u32 %v301, 16
      %v333 = vrot.slane %v331, 5
      %v334 = vsel %vm310, %v329, %v333
      %v335 = vshrl.u32 %v301, 16
      %v337 = vrot.slane %v335, 4
      %v338 = vor.u32 %v337, %v333
      %v339 = vrot.slane %v338, 4
      %v341 = vshll.u32 %v302, 16
      %v343 = vrot.slane %v341, 5
      %v344 = vsel %vm310, %v339, %v343
      %v345 = vshrl.u32 %v302, 16
      %v347 = vrot.slane %v345, 4
      %v348 = vor.u32 %v347, %v343
      %v349 = vrot.slane %v348, 4
      %v351 = vshll.u32 %v303, 16
      %v353 = vrot.slane %v351, 5
      %v354 = vsel %vm310, %v349, %v353
      %v355 = vshrl.u32 %v303, 16
      %v357 = vrot.slane %v355, 4
      %v358 = vor.u32 %v357, %v353
      %v359 = vrot.slane %v358, 4
      %v361 = vshll.u32 %v304, 16
      %v363 = vrot.slane %v361, 5
      %v364 = vsel %vm310, %v359, %v363
      %v365 = vshrl.u32 %v304, 16
      %v367 = vrot.slane %v365, 4
      %v368 = vor.u32 %v367, %v363
      %v369 = vrot.slane %v368, 4
      %v371 = vshll.u32 %v305, 16
      %v373 = vrot.slane %v371, 5
      %v374 = vsel %vm310, %v369, %v373
      %v375 = vshrl.u32 %v305, 16
      %v377 = vrot.slane %v375, 4
      %v378 = vor.u32 %v377, %v373
      %v379 = vrot.slane %v378, 4
      %v381 = vshll.u32 %v306, 16
      %v383 = vrot.slane %v381, 5
      %v384 = vsel %vm310, %v379, %v383
      %v385 = vshrl.u32 %v306, 16
      %v387 = vrot.slane %v385, 4
      %v388 = vor.u32 %v387, %v383
      %v389 = vrot.slane %v388, 4
      %v391 = vshll.u32 %v307, 16
      %v393 = vrot.slane %v391, 5
      %v394 = vsel %vm310, %v389, %v393
      %v395 = vshrl.u32 %v307, 16
      %v397 = vrot.slane %v395, 4
      %v398 = vor.u32 %v397, %v393
      %v399 = vrot.slane %v398, 4
      %409 = vst [vmem:[#allocation2 + $0x4] sm:$0xf] %v324
      %410 = vst [vmem:[#allocation2 + $0x14] sm:$0xf] %v334
      %411 = vst [vmem:[#allocation2 + $0x24] sm:$0xf] %v344
      %412 = vst [vmem:[#allocation2 + $0x34] sm:$0xf] %v354
      %413 = vst [vmem:[#allocation2 + $0x44] sm:$0xf] %v364
      %414 = vst [vmem:[#allocation2 + $0x54] sm:$0xf] %v374
      %415 = vst [vmem:[#allocation2 + $0x64] sm:$0xf] %v384
      %416 = vst [vmem:[#allocation2 + $0x74] sm:$0xf] %v394
      %vm417 = vcmask 1043456
      %vm418 = vmand %vm417, %vm308
      %v419 = vld [vmem:[#allocation2 + $0x84] sm:$0xf]
      %v420 = vsel %vm418, %v399, %v419
      %421 = vst [vmem:[#allocation2 + $0x84] sm:$0xf] %v420
      %v422 = vld [vmem:[%s267] sm:$0x1]
      %v424 = vshll.u32 %v422, 16
      %v426 = vrot.slane %v424, 5
      %vm428 = vcmask 1043459
      %vm429 = vsmask.f32 7950
      %vm430 = vmand %vm428, %vm429
      %v431 = vld [vmem:[#allocation2 + $0x84] sm:$0x8]
      %v432 = vsel %vm430, %v426, %v431
      %433 = vst [vmem:[#allocation2 + $0x84] sm:$0x8] %v432
      %v434 = vld [vmem:[%s256 + $0x4] sm:$0xf]
      %v435 = vld [vmem:[%s256 + $0x8] sm:$0xf]
      %v436 = vld [vmem:[%s256 + $0xc] sm:$0xf]
      %v437 = vld [vmem:[%s256 + $0x10] sm:$0xf]
      %v438 = vld [vmem:[%s256 + $0x14] sm:$0xf]
      %v439 = vld [vmem:[%s256 + $0x18] sm:$0xf]
      %v440 = vld [vmem:[%s256 + $0x1c] sm:$0xf]
      %v441 = vld [vmem:[%s256 + $0x20] sm:$0xf]
      %v443 = vshrl.u32 %v434, 16
      %v445 = vrot.slane %v443, 4
      %v446 = vshll.u32 %v434, 16
      %v448 = vrot.slane %v446, 5
      %v449 = vor.u32 %v445, %v448
      %v450 = vrot.slane %v449, 4
      %v452 = vshll.u32 %v435, 16
      %v454 = vrot.slane %v452, 5
      %v455 = vsel %vm310, %v450, %v454
      %v456 = vshrl.u32 %v435, 16
      %v458 = vrot.slane %v456, 4
      %v459 = vor.u32 %v458, %v454
      %v460 = vrot.slane %v459, 4
      %v462 = vshll.u32 %v436, 16
      %v464 = vrot.slane %v462, 5
      %v465 = vsel %vm310, %v460, %v464
      %v466 = vshrl.u32 %v436, 16
      %v468 = vrot.slane %v466, 4
      %v469 = vor.u32 %v468, %v464
      %v470 = vrot.slane %v469, 4
      %v472 = vshll.u32 %v437, 16
      %v474 = vrot.slane %v472, 5
      %v475 = vsel %vm310, %v470, %v474
      %v476 = vshrl.u32 %v437, 16
      %v478 = vrot.slane %v476, 4
      %v479 = vor.u32 %v478, %v474
      %v480 = vrot.slane %v479, 4
      %v482 = vshll.u32 %v438, 16
      %v484 = vrot.slane %v482, 5
      %v485 = vsel %vm310, %v480, %v484
      %v486 = vshrl.u32 %v438, 16
      %v488 = vrot.slane %v486, 4
      %v489 = vor.u32 %v488, %v484
      %v490 = vrot.slane %v489, 4
      %v492 = vshll.u32 %v439, 16
      %v494 = vrot.slane %v492, 5
      %v495 = vsel %vm310, %v490, %v494
      %v496 = vshrl.u32 %v439, 16
      %v498 = vrot.slane %v496, 4
      %v499 = vor.u32 %v498, %v494
      %v500 = vrot.slane %v499, 4
      %v502 = vshll.u32 %v440, 16
      %v504 = vrot.slane %v502, 5
      %v505 = vsel %vm310, %v500, %v504
      %v506 = vshrl.u32 %v440, 16
      %v508 = vrot.slane %v506, 4
      %v509 = vor.u32 %v508, %v504
      %v510 = vrot.slane %v509, 4
      %v512 = vshll.u32 %v441, 16
      %v514 = vrot.slane %v512, 5
      %v515 = vsel %vm310, %v510, %v514
      %v516 = vshrl.u32 %v441, 16
      %v518 = vrot.slane %v516, 4
      %v519 = vor.u32 %v518, %v514
      %v520 = vrot.slane %v519, 4
      %529 = vst [vmem:[#allocation2 + $0x8] sm:$0xf] %v455
      %530 = vst [vmem:[#allocation2 + $0x18] sm:$0xf] %v465
      %531 = vst [vmem:[#allocation2 + $0x28] sm:$0xf] %v475
      %532 = vst [vmem:[#allocation2 + $0x38] sm:$0xf] %v485
      %533 = vst [vmem:[#allocation2 + $0x48] sm:$0xf] %v495
      %534 = vst [vmem:[#allocation2 + $0x58] sm:$0xf] %v505
      %535 = vst [vmem:[#allocation2 + $0x68] sm:$0xf] %v515
      %v536 = vld [vmem:[#allocation2 + $0x78] sm:$0xf]
      %v537 = vsel %vm418, %v520, %v536
      %538 = vst [vmem:[#allocation2 + $0x78] sm:$0xf] %v537
      %v539 = vld [vmem:[%s267] sm:$0xf]
      %v540 = vld [vmem:[%s267 + $0x4] sm:$0x1]
      %v542 = vshll.u32 %v539, 16
      %v544 = vrot.slane %v542, 5
      %v545 = vshrl.u32 %v539, 16
      %v547 = vrot.slane %v545, 4
      %v548 = vor.u32 %v547, %v544
      %v549 = vrot.slane %v548, 4
      %v551 = vshll.u32 %v540, 16
      %v553 = vrot.slane %v551, 5
      %v554 = vsel %vm310, %v549, %v553
      %v557 = vld [vmem:[#allocation2 + $0x78] sm:$0x8]
      %v558 = vsel %vm430, %v544, %v557
      %559 = vst [vmem:[#allocation2 + $0x78] sm:$0x8] %v558
      %560 = vst [vmem:[#allocation2 + $0x88] sm:$0xf] %v554
      %v561 = vld [vmem:[%s256 + $0x4] sm:$0xe]
      %v562 = vld [vmem:[%s256 + $0x8] sm:$0xf]
      %v563 = vld [vmem:[%s256 + $0xc] sm:$0xf]
      %v564 = vld [vmem:[%s256 + $0x10] sm:$0xf]
      %v565 = vld [vmem:[%s256 + $0x14] sm:$0xf]
      %v566 = vld [vmem:[%s256 + $0x18] sm:$0xf]
      %v567 = vld [vmem:[%s256 + $0x1c] sm:$0xf]
      %v568 = vld [vmem:[%s256 + $0x20] sm:$0xf]
      %vm577 = vcmask 1042432
      %vm578 = vcmask 1046532
      %vm579 = vmor %vm577, %vm578
      %v580 = vrot.slane %v561, 5
      %v581 = vrot.slane %v580, 4
      %v582 = vrot.slane %v562, 5
      %v583 = vsel %vm579, %v581, %v582
      %v584 = vrot.slane %v582, 4
      %v585 = vrot.slane %v563, 5
      %v586 = vsel %vm579, %v584, %v585
      %v587 = vrot.slane %v585, 4
      %v588 = vrot.slane %v564, 5
      %v589 = vsel %vm579, %v587, %v588
      %v590 = vrot.slane %v588, 4
      %v591 = vrot.slane %v565, 5
      %v592 = vsel %vm579, %v590, %v591
      %v593 = vrot.slane %v591, 4
      %v594 = vrot.slane %v566, 5
      %v595 = vsel %vm579, %v593, %v594
      %v596 = vrot.slane %v594, 4
      %v597 = vrot.slane %v567, 5
      %v598 = vsel %vm579, %v596, %v597
      %v599 = vrot.slane %v597, 4
      %v600 = vrot.slane %v568, 5
      %v601 = vsel %vm579, %v599, %v600
      %v602 = vrot.slane %v600, 4
      %611 = vst [vmem:[#allocation2 + $0xc] sm:$0xf] %v583
      %612 = vst [vmem:[#allocation2 + $0x1c] sm:$0xf] %v586
      %613 = vst [vmem:[#allocation2 + $0x2c] sm:$0xf] %v589
      %614 = vst [vmem:[#allocation2 + $0x3c] sm:$0xf] %v592
      %615 = vst [vmem:[#allocation2 + $0x4c] sm:$0xf] %v595
      %616 = vst [vmem:[#allocation2 + $0x5c] sm:$0xf] %v598
      %617 = vst [vmem:[#allocation2 + $0x6c] sm:$0xf] %v601
      %618 = vst [vmem:[#allocation2 + $0x7c] sm:$0x7] %v602
      %v619 = vld [vmem:[%s267] sm:$0xf]
      %v620 = vld [vmem:[%s267 + $0x4] sm:$0x1]
      %v623 = vrot.slane %v619, 5
      %v624 = vrot.slane %v623, 4
      %v625 = vrot.slane %v620, 5
      %v626 = vsel %vm579, %v624, %v625
      %629 = vst [vmem:[#allocation2 + $0x7c] sm:$0x8] %v623
      %630 = vst [vmem:[#allocation2 + $0x8c] sm:$0xf] %v626
      %v631 = vld [vmem:[#allocation2] sm:$0xff]
      %v632 = vld [vmem:[#allocation2 + $0x8] sm:$0xff]
      %v633 = vld [vmem:[#allocation2 + $0x10] sm:$0xff]
      %v634 = vld [vmem:[#allocation2 + $0x18] sm:$0xff]
      %v635 = vld [vmem:[#allocation2 + $0x20] sm:$0xff]
      %v636 = vld [vmem:[#allocation2 + $0x28] sm:$0xff]
      %v637 = vld [vmem:[#allocation2 + $0x30] sm:$0xff]
      %v638 = vld [vmem:[#allocation2 + $0x38] sm:$0xff]
      %v639 = vld [vmem:[#allocation2 + $0x40] sm:$0xff]
      %v640 = vld [vmem:[#allocation2 + $0x48] sm:$0xff]
      %v641 = vld [vmem:[#allocation2 + $0x50] sm:$0xff]
      %v642 = vld [vmem:[#allocation2 + $0x58] sm:$0xff]
      %v643 = vld [vmem:[#allocation2 + $0x60] sm:$0xff]
      %v644 = vld [vmem:[#allocation2 + $0x68] sm:$0xff]
      %v645 = vld [vmem:[#allocation2 + $0x70] sm:$0xff]
      %v646 = vld [vmem:[#allocation2 + $0x78] sm:$0xff]
      %v647 = vld [vmem:[#allocation2 + $0x80] sm:$0xff]
      %v648 = vld [vmem:[#allocation2 + $0x88] sm:$0xff]
      %v649 = vld [vmem:[%s2] sm:$0xf]
      %v650 = vld [vmem:[%s2 + $0x4] sm:$0xf]
      %v651 = vld [vmem:[%s2 + $0x8] sm:$0xf]
      %v652 = vld [vmem:[%s2 + $0xc] sm:$0xf]
      %v653 = vld [vmem:[%s2 + $0x10] sm:$0xf]
      %v654 = vld [vmem:[%s2 + $0x14] sm:$0xf]
      %v655 = vld [vmem:[%s2 + $0x18] sm:$0xf]
      %v656 = vld [vmem:[%s2 + $0x1c] sm:$0xf]
      %v657 = vld [vmem:[%s2 + $0x20] sm:$0xf]
      %v658 = vld [vmem:[%s2 + $0x24] sm:$0xf]
      %v659 = vld [vmem:[%s2 + $0x28] sm:$0xf]
      %v660 = vld [vmem:[%s2 + $0x2c] sm:$0xf]
      %v661 = vld [vmem:[%s2 + $0x30] sm:$0xf]
      %v662 = vld [vmem:[%s2 + $0x34] sm:$0xf]
      %v663 = vld [vmem:[%s2 + $0x38] sm:$0xf]
      %v664 = vld [vmem:[%s2 + $0x3c] sm:$0xf]
      %v665 = vld [vmem:[%s2 + $0x40] sm:$0xf]
      %v666 = vld [vmem:[%s2 + $0x44] sm:$0xf]
      %v667 = vld [vmem:[%s2 + $0x48] sm:$0xf]
      %v668 = vld [vmem:[%s2 + $0x4c] sm:$0xf]
      %v669 = vld [vmem:[%s2 + $0x50] sm:$0xf]
      %v670 = vld [vmem:[%s2 + $0x54] sm:$0xf]
      %v671 = vld [vmem:[%s2 + $0x58] sm:$0xf]
      %v672 = vld [vmem:[%s2 + $0x5c] sm:$0xf]
      %v673 = vld [vmem:[%s2 + $0x60] sm:$0xf]
      %v674 = vld [vmem:[%s2 + $0x64] sm:$0xf]
      %v675 = vld [vmem:[%s2 + $0x68] sm:$0xf]
      %v676 = vld [vmem:[%s2 + $0x6c] sm:$0xf]
      %v677 = vld [vmem:[%s2 + $0x70] sm:$0xf]
      %v678 = vld [vmem:[%s2 + $0x74] sm:$0xf]
      %v679 = vld [vmem:[%s2 + $0x78] sm:$0xf]
      %v680 = vld [vmem:[%s2 + $0x7c] sm:$0xf]
      %v681 = vld [vmem:[%s2 + $0x80] sm:$0xf]
      %v682 = vld [vmem:[%s2 + $0x84] sm:$0xf]
      %v683 = vld [vmem:[%s2 + $0x88] sm:$0xf]
      %v684 = vld [vmem:[%s2 + $0x8c] sm:$0xf]
      %v685 = vld [vmem:[%s2 + $0x90] sm:$0xf]
      %v686 = vld [vmem:[%s2 + $0x94] sm:$0xf]
      %v687 = vld [vmem:[%s2 + $0x98] sm:$0xf]
      %v688 = vld [vmem:[%s2 + $0x9c] sm:$0xf]
      %v689 = vld [vmem:[%s2 + $0xa0] sm:$0xf]
      %v690 = vld [vmem:[%s2 + $0xa4] sm:$0xf]
      %v691 = vld [vmem:[%s2 + $0xa8] sm:$0xf]
      %v692 = vld [vmem:[%s2 + $0xac] sm:$0xf]
      %v693 = vld [vmem:[%s2 + $0xb0] sm:$0xf]
      %v694 = vld [vmem:[%s2 + $0xb4] sm:$0xf]
      %v695 = vld [vmem:[%s2 + $0xb8] sm:$0xf]
      %v696 = vld [vmem:[%s2 + $0xbc] sm:$0xf]
      %v697 = vld [vmem:[%s2 + $0xc0] sm:$0xf]
      %v698 = vld [vmem:[%s2 + $0xc4] sm:$0xf]
      %v699 = vld [vmem:[%s2 + $0xc8] sm:$0xf]
      %v700 = vld [vmem:[%s2 + $0xcc] sm:$0xf]
      %v701 = vld [vmem:[%s2 + $0xd0] sm:$0xf]
      %v702 = vld [vmem:[%s2 + $0xd4] sm:$0xf]
      %v703 = vld [vmem:[%s2 + $0xd8] sm:$0xf]
      %v704 = vld [vmem:[%s2 + $0xdc] sm:$0xf]
      %v705 = vld [vmem:[%s2 + $0xe0] sm:$0xf]
      %v706 = vld [vmem:[%s2 + $0xe4] sm:$0xf]
      %v707 = vld [vmem:[%s2 + $0xe8] sm:$0xf]
      %v708 = vld [vmem:[%s2 + $0xec] sm:$0xf]
      %v709 = vld [vmem:[%s2 + $0xf0] sm:$0xf]
      %v710 = vld [vmem:[%s2 + $0xf4] sm:$0xf]
      %v711 = vld [vmem:[%s2 + $0xf8] sm:$0xf]
      %v712 = vld [vmem:[%s2 + $0xfc] sm:$0xf]
      %v713 = vld [vmem:[%s3] sm:$0x1]
      %v715 = vlaneseq
      %v716 = vshrl.u32 %v715, 7
      %v717 = vsub.s32 0, %v716
      %v718 = vrot.slane %v713, %v717
      %v738 = vunpack.c.l.b16 %v631
      %v739 = vunpack.c.h.b16 %v631
      %v740 = vunpack.c.l.b16 %v632
      %v741 = vunpack.c.h.b16 %v632
      %v742 = vunpack.c.l.b16 %v633
      %v743 = vunpack.c.h.b16 %v633
      %v744 = vunpack.c.l.b16 %v634
      %v745 = vunpack.c.h.b16 %v634
      %v746 = vunpack.c.l.b16 %v635
      %v747 = vunpack.c.h.b16 %v635
      %v748 = vunpack.c.l.b16 %v636
      %v749 = vunpack.c.h.b16 %v636
      %v750 = vunpack.c.l.b16 %v637
      %v751 = vunpack.c.h.b16 %v637
      %v752 = vunpack.c.l.b16 %v638
      %v753 = vunpack.c.h.b16 %v638
      %v754 = vunpack.c.l.b16 %v639
      %v755 = vunpack.c.h.b16 %v639
      %v756 = vunpack.c.l.b16 %v640
      %v757 = vunpack.c.h.b16 %v640
      %v758 = vunpack.c.l.b16 %v641
      %v759 = vunpack.c.h.b16 %v641
      %v760 = vunpack.c.l.b16 %v642
      %v761 = vunpack.c.h.b16 %v642
      %v762 = vunpack.c.l.b16 %v643
      %v763 = vunpack.c.h.b16 %v643
      %v764 = vunpack.c.l.b16 %v644
      %v765 = vunpack.c.h.b16 %v644
      %v766 = vunpack.c.l.b16 %v645
      %v767 = vunpack.c.h.b16 %v645
      %v768 = vunpack.c.l.b16 %v646
      %v769 = vunpack.c.h.b16 %v646
      %v770 = vunpack.c.l.b16 %v647
      %v771 = vunpack.c.h.b16 %v647
      %v772 = vunpack.c.l.b16 %v648
      %v773 = vunpack.c.h.b16 %v648
      %v774 = vpack.c.b16 %v742, %v738
      %v775 = vpack.c.b16 %v743, %v739
      %v776 = vpack.c.b16 %v744, %v740
      %v777 = vpack.c.b16 %v745, %v741
      %v778 = vpack.c.b16 %v750, %v746
      %v779 = vpack.c.b16 %v751, %v747
      %v780 = vpack.c.b16 %v752, %v748
      %v781 = vpack.c.b16 %v753, %v749
      %v782 = vpack.c.b16 %v758, %v754
      %v783 = vpack.c.b16 %v759, %v755
      %v784 = vpack.c.b16 %v760, %v756
      %v785 = vpack.c.b16 %v761, %v757
      %v786 = vpack.c.b16 %v766, %v762
      %v787 = vpack.c.b16 %v767, %v763
      %v788 = vpack.c.b16 %v768, %v764
      %v789 = vpack.c.b16 %v769, %v765
      %v790 = vpack.c.b16 %v770, %v770
      %v791 = vpack.c.b16 %v771, %v771
      %v792 = vpack.c.b16 %v772, %v772
      %v793 = vpack.c.b16 %v773, %v773
      %v878 = vunpack.c.l.b16 %v649
      %v879 = vunpack.c.l.b16 %v650
      %v880 = vunpack.c.l.b16 %v651
      %v881 = vunpack.c.l.b16 %v652
      %v882 = vunpack.c.l.b16 %v653
      %v883 = vunpack.c.l.b16 %v654
      %v884 = vunpack.c.l.b16 %v655
      %v885 = vunpack.c.l.b16 %v656
      %v886 = vunpack.c.l.b16 %v657
      %v887 = vunpack.c.l.b16 %v658
      %v888 = vunpack.c.l.b16 %v659
      %v889 = vunpack.c.l.b16 %v660
      %v890 = vunpack.c.l.b16 %v661
      %v891 = vunpack.c.l.b16 %v662
      %v892 = vunpack.c.l.b16 %v663
      %v893 = vunpack.c.l.b16 %v664
      %v894 = vunpack.c.l.b16 %v665
      %v895 = vunpack.c.l.b16 %v666
      %v896 = vunpack.c.l.b16 %v667
      %v897 = vunpack.c.l.b16 %v668
      %v898 = vunpack.c.l.b16 %v669
      %v899 = vunpack.c.l.b16 %v670
      %v900 = vunpack.c.l.b16 %v671
      %v901 = vunpack.c.l.b16 %v672
      %v902 = vunpack.c.l.b16 %v673
      %v903 = vunpack.c.l.b16 %v674
      %v904 = vunpack.c.l.b16 %v675
      %v905 = vunpack.c.l.b16 %v676
      %v906 = vunpack.c.l.b16 %v677
      %v907 = vunpack.c.l.b16 %v678
      %v908 = vunpack.c.l.b16 %v679
      %v909 = vunpack.c.l.b16 %v680
      %v910 = vunpack.c.l.b16 %v681
      %v911 = vunpack.c.l.b16 %v682
      %v912 = vunpack.c.l.b16 %v683
      %v913 = vunpack.c.l.b16 %v684
      %v914 = vunpack.c.l.b16 %v685
      %v915 = vunpack.c.l.b16 %v686
      %v916 = vunpack.c.l.b16 %v687
      %v917 = vunpack.c.l.b16 %v688
      %v918 = vunpack.c.l.b16 %v689
      %v919 = vunpack.c.l.b16 %v690
      %v920 = vunpack.c.l.b16 %v691
      %v921 = vunpack.c.l.b16 %v692
      %v922 = vunpack.c.l.b16 %v693
      %v923 = vunpack.c.l.b16 %v694
      %v924 = vunpack.c.l.b16 %v695
      %v925 = vunpack.c.l.b16 %v696
      %v926 = vunpack.c.l.b16 %v697
      %v927 = vunpack.c.l.b16 %v698
      %v928 = vunpack.c.l.b16 %v699
      %v929 = vunpack.c.l.b16 %v700
      %v930 = vunpack.c.l.b16 %v701
      %v931 = vunpack.c.l.b16 %v702
      %v932 = vunpack.c.l.b16 %v703
      %v933 = vunpack.c.l.b16 %v704
      %v934 = vunpack.c.l.b16 %v705
      %v935 = vunpack.c.l.b16 %v706
      %v936 = vunpack.c.l.b16 %v707
      %v937 = vunpack.c.l.b16 %v708
      %v938 = vunpack.c.l.b16 %v709
      %v939 = vunpack.c.l.b16 %v710
      %v940 = vunpack.c.l.b16 %v711
      %v941 = vunpack.c.l.b16 %v712
      %v942 = vpack.c.b16 %v879, %v878
      %v943 = vpack.c.b16 %v881, %v880
      %v944 = vpack.c.b16 %v883, %v882
      %v945 = vpack.c.b16 %v885, %v884
      %v946 = vpack.c.b16 %v887, %v886
      %v947 = vpack.c.b16 %v889, %v888
      %v948 = vpack.c.b16 %v891, %v890
      %v949 = vpack.c.b16 %v893, %v892
      %v950 = vpack.c.b16 %v895, %v894
      %v951 = vpack.c.b16 %v897, %v896
      %v952 = vpack.c.b16 %v899, %v898
      %v953 = vpack.c.b16 %v901, %v900
      %v954 = vpack.c.b16 %v903, %v902
      %v955 = vpack.c.b16 %v905, %v904
      %v956 = vpack.c.b16 %v907, %v906
      %v957 = vpack.c.b16 %v909, %v908
      %v958 = vpack.c.b16 %v911, %v910
      %v959 = vpack.c.b16 %v913, %v912
      %v960 = vpack.c.b16 %v915, %v914
      %v961 = vpack.c.b16 %v917, %v916
      %v962 = vpack.c.b16 %v919, %v918
      %v963 = vpack.c.b16 %v921, %v920
      %v964 = vpack.c.b16 %v923, %v922
      %v965 = vpack.c.b16 %v925, %v924
      %v966 = vpack.c.b16 %v927, %v926
      %v967 = vpack.c.b16 %v929, %v928
      %v968 = vpack.c.b16 %v931, %v930
      %v969 = vpack.c.b16 %v933, %v932
      %v970 = vpack.c.b16 %v935, %v934
      %v971 = vpack.c.b16 %v937, %v936
      %v972 = vpack.c.b16 %v939, %v938
      %v973 = vpack.c.b16 %v941, %v940
      %1006 = vmatprep.subr.bf16.mxu0 0
      %1007 = vmatpush1.bf16.msra.mxu0 %v942
      %1008 = vmatprep.subr.bf16.mxu0 0
      %1009 = vmatpush1.bf16.msra.mxu0 %v943
      %1010 = vmatprep.subr.bf16.mxu0 0
      %1011 = vmatpush1.bf16.msra.mxu0 %v944
      %1012 = vmatprep.subr.bf16.mxu0 0
      %1013 = vmatpush1.bf16.msra.mxu0 %v945
      %1014 = vmatprep.subr.bf16.mxu0 0
      %1015 = vmatpush1.bf16.msra.mxu0 %v946
      %1016 = vmatprep.subr.bf16.mxu0 0
      %1017 = vmatpush1.bf16.msra.mxu0 %v947
      %1018 = vmatprep.subr.bf16.mxu0 0
      %1019 = vmatpush1.bf16.msra.mxu0 %v948
      %1020 = vmatprep.subr.bf16.mxu0 0
      %1021 = vmatpush1.bf16.msra.mxu0 %v949
      %1022 = vmatprep.subr.bf16.mxu0 0
      %1023 = vmatpush1.bf16.msra.mxu0 %v950
      %1024 = vmatprep.subr.bf16.mxu0 0
      %1025 = vmatpush1.bf16.msra.mxu0 %v951
      %1026 = vmatprep.subr.bf16.mxu0 0
      %1027 = vmatpush1.bf16.msra.mxu0 %v952
      %1028 = vmatprep.subr.bf16.mxu0 0
      %1029 = vmatpush1.bf16.msra.mxu0 %v953
      %1030 = vmatprep.subr.bf16.mxu0 0
      %1031 = vmatpush1.bf16.msra.mxu0 %v954
      %1032 = vmatprep.subr.bf16.mxu0 0
      %1033 = vmatpush1.bf16.msra.mxu0 %v955
      %1034 = vmatprep.subr.bf16.mxu0 0
      %1035 = vmatpush1.bf16.msra.mxu0 %v956
      %1036 = vmatprep.subr.bf16.mxu0 0
      %1037 = vmatpush1.bf16.msra.mxu0 %v957
      %1038 = vmatprep.mubr.bf16.mxu0 %v775
      %1039 = vmatmul.mubr.bf16.gmra.mrb[0].mxu0 %v774
      %v1040 = vpop.f32.mrb[0].mxu0
      %v1041 = vadd.f32 %v718, %v1040
      %v1042 = vpop.f32.mrb[0].mxu0
      %v1043 = vpop.f32.mrb[0].mxu0
      %v1044 = vadd.f32 %v718, %v1043
      %v1045 = vpop.f32.mrb[0].mxu0
      %1046 = vmatprep.mubr.bf16.mxu0 %v779
      %1047 = vmatmul.mubr.bf16.gmra.mrb[0].mxu0 %v778
      %v1048 = vpop.f32.mrb[0].mxu0
      %v1049 = vadd.f32 %v718, %v1048
      %v1050 = vpop.f32.mrb[0].mxu0
      %v1051 = vpop.f32.mrb[0].mxu0
      %v1052 = vadd.f32 %v718, %v1051
      %v1053 = vpop.f32.mrb[0].mxu0
      %1054 = vmatprep.mubr.bf16.mxu0 %v783
      %1055 = vmatmul.mubr.bf16.gmra.mrb[0].mxu0 %v782
      %v1056 = vpop.f32.mrb[0].mxu0
      %v1057 = vadd.f32 %v718, %v1056
      %v1058 = vpop.f32.mrb[0].mxu0
      %v1059 = vpop.f32.mrb[0].mxu0
      %v1060 = vadd.f32 %v718, %v1059
      %v1061 = vpop.f32.mrb[0].mxu0
      %1062 = vmatprep.mubr.bf16.mxu0 %v787
      %1063 = vmatmul.mubr.bf16.gmra.mrb[0].mxu0 %v786
      %v1064 = vpop.f32.mrb[0].mxu0
      %v1065 = vadd.f32 %v718, %v1064
      %v1066 = vpop.f32.mrb[0].mxu0
      %v1067 = vpop.f32.mrb[0].mxu0
      %v1068 = vadd.f32 %v718, %v1067
      %v1069 = vpop.f32.mrb[0].mxu0
      %1070 = vmatprep.mubr.bf16.mxu0 %v791
      %1071 = vmatmul.mubr.bf16.gmra.mrb[0].mxu0 %v790
      %v1072 = vpop.f32.mrb[0].mxu0
      %v1073 = vadd.f32 %v718, %v1072
      %v1074 = vpop.f32.mrb[0].mxu0
      %v1075 = vpop.f32.mrb[0].mxu0
      %v1076 = vpop.f32.mrb[0].mxu0
      %1077 = vdwg.mxu0
      %1078 = vmatprep.subr.bf16.mxu0 0
      %1079 = vmatpush1.bf16.msra.mxu0 %v958
      %1080 = vmatprep.subr.bf16.mxu0 0
      %1081 = vmatpush1.bf16.msra.mxu0 %v959
      %1082 = vmatprep.subr.bf16.mxu0 0
      %1083 = vmatpush1.bf16.msra.mxu0 %v960
      %1084 = vmatprep.subr.bf16.mxu0 0
      %1085 = vmatpush1.bf16.msra.mxu0 %v961
      %1086 = vmatprep.subr.bf16.mxu0 0
      %1087 = vmatpush1.bf16.msra.mxu0 %v962
      %1088 = vmatprep.subr.bf16.mxu0 0
      %1089 = vmatpush1.bf16.msra.mxu0 %v963
      %1090 = vmatprep.subr.bf16.mxu0 0
      %1091 = vmatpush1.bf16.msra.mxu0 %v964
      %1092 = vmatprep.subr.bf16.mxu0 0
      %1093 = vmatpush1.bf16.msra.mxu0 %v965
      %1094 = vmatprep.subr.bf16.mxu0 0
      %1095 = vmatpush1.bf16.msra.mxu0 %v966
      %1096 = vmatprep.subr.bf16.mxu0 0
      %1097 = vmatpush1.bf16.msra.mxu0 %v967
      %1098 = vmatprep.subr.bf16.mxu0 0
      %1099 = vmatpush1.bf16.msra.mxu0 %v968
      %1100 = vmatprep.subr.bf16.mxu0 0
      %1101 = vmatpush1.bf16.msra.mxu0 %v969
      %1102 = vmatprep.subr.bf16.mxu0 0
      %1103 = vmatpush1.bf16.msra.mxu0 %v970
      %1104 = vmatprep.subr.bf16.mxu0 0
      %1105 = vmatpush1.bf16.msra.mxu0 %v971
      %1106 = vmatprep.subr.bf16.mxu0 0
      %1107 = vmatpush1.bf16.msra.mxu0 %v972
      %1108 = vmatprep.subr.bf16.mxu0 0
      %1109 = vmatpush1.bf16.msra.mxu0 %v973
      %1110 = vmatprep.mubr.bf16.mxu0 %v777
      %1111 = vmatmul.mubr.bf16.gmra.mrb[0].mxu0 %v776
      %v1112 = vpop.f32.mrb[0].mxu0
      %v1113 = vadd.f32 %v1041, %v1112
      %v1114 = vpop.f32.mrb[0].mxu0
      %v1115 = vpop.f32.mrb[0].mxu0
      %v1116 = vadd.f32 %v1044, %v1115
      %v1117 = vpop.f32.mrb[0].mxu0
      %1118 = vmatprep.mubr.bf16.mxu0 %v781
      %1119 = vmatmul.mubr.bf16.gmra.mrb[0].mxu0 %v780
      %v1120 = vpop.f32.mrb[0].mxu0
      %v1121 = vadd.f32 %v1049, %v1120
      %v1122 = vpop.f32.mrb[0].mxu0
      %v1123 = vpop.f32.mrb[0].mxu0
      %v1124 = vadd.f32 %v1052, %v1123
      %v1125 = vpop.f32.mrb[0].mxu0
      %1126 = vmatprep.mubr.bf16.mxu0 %v785
      %1127 = vmatmul.mubr.bf16.gmra.mrb[0].mxu0 %v784
      %v1128 = vpop.f32.mrb[0].mxu0
      %v1129 = vadd.f32 %v1057, %v1128
      %v1130 = vpop.f32.mrb[0].mxu0
      %v1131 = vpop.f32.mrb[0].mxu0
      %v1132 = vadd.f32 %v1060, %v1131
      %v1133 = vpop.f32.mrb[0].mxu0
      %1134 = vmatprep.mubr.bf16.mxu0 %v789
      %1135 = vmatmul.mubr.bf16.gmra.mrb[0].mxu0 %v788
      %v1136 = vpop.f32.mrb[0].mxu0
      %v1137 = vadd.f32 %v1065, %v1136
      %v1138 = vpop.f32.mrb[0].mxu0
      %v1139 = vpop.f32.mrb[0].mxu0
      %v1140 = vadd.f32 %v1068, %v1139
      %v1141 = vpop.f32.mrb[0].mxu0
      %1142 = vmatprep.mubr.bf16.mxu0 %v793
      %1143 = vmatmul.mubr.bf16.gmra.mrb[0].mxu0 %v792
      %v1144 = vpop.f32.mrb[0].mxu0
      %v1145 = vadd.f32 %v1073, %v1144
      %v1146 = vpop.f32.mrb[0].mxu0
      %v1147 = vpop.f32.mrb[0].mxu0
      %v1148 = vpop.f32.mrb[0].mxu0
      %1149 = vdwg.mxu0
      %vm1150 = vcmp.ge.f32.partialorder %v1113, 0.0
      %vm1151 = vcmp.ge.f32.partialorder %v1116, 0.0
      %vm1152 = vcmp.ge.f32.partialorder %v1121, 0.0
      %vm1153 = vcmp.ge.f32.partialorder %v1124, 0.0
      %vm1154 = vcmp.ge.f32.partialorder %v1129, 0.0
      %vm1155 = vcmp.ge.f32.partialorder %v1132, 0.0
      %vm1156 = vcmp.ge.f32.partialorder %v1137, 0.0
      %vm1157 = vcmp.ge.f32.partialorder %v1140, 0.0
      %vm1158 = vcmp.ge.f32.partialorder %v1145, 0.0
      %v1159 = vmul.f32 %v1113, 0.2
      %v1160 = vmul.f32 %v1116, 0.2
      %v1161 = vmul.f32 %v1121, 0.2
      %v1162 = vmul.f32 %v1124, 0.2
      %v1163 = vmul.f32 %v1129, 0.2
      %v1164 = vmul.f32 %v1132, 0.2
      %v1165 = vmul.f32 %v1137, 0.2
      %v1166 = vmul.f32 %v1140, 0.2
      %v1167 = vmul.f32 %v1145, 0.2
      %v1168 = vsel %vm1150, %v1113, %v1159
      %v1169 = vsel %vm1151, %v1116, %v1160
      %v1170 = vsel %vm1152, %v1121, %v1161
      %v1171 = vsel %vm1153, %v1124, %v1162
      %v1172 = vsel %vm1154, %v1129, %v1163
      %v1173 = vsel %vm1155, %v1132, %v1164
      %v1174 = vsel %vm1156, %v1137, %v1165
      %v1175 = vsel %vm1157, %v1140, %v1166
      %v1176 = vsel %vm1158, %v1145, %v1167
      %1177 = vst [vmem:[%s278] sm:$0xff] %v1168
      %1178 = vst [vmem:[%s278 + $0x8] sm:$0xff] %v1169
      %1179 = vst [vmem:[%s278 + $0x10] sm:$0xff] %v1170
      %1180 = vst [vmem:[%s278 + $0x18] sm:$0xff] %v1171
      %1181 = vst [vmem:[%s278 + $0x20] sm:$0xff] %v1172
      %1182 = vst [vmem:[%s278 + $0x28] sm:$0xff] %v1173
      %1183 = vst [vmem:[%s278 + $0x30] sm:$0xff] %v1174
      %1184 = vst [vmem:[%s278 + $0x38] sm:$0xff] %v1175
      %1185 = vst [vmem:[%s278 + $0x40] sm:$0xff] %v1176
      %s1186 = smul.u32 9, %s20
      %p1187 = scmp.lt.s32.totalorder %s19, 1
      %s1188 = scalar_select %p1187, %s19, 1
      %p1189 = scmp.lt.s32.totalorder %s1186, 8
      %s1190 = scalar_select %p1189, %s1186, 8
      %s1191 = smul.addr %s1188, 9
      %s1192 = sadd.s32 %s1190, %s1191
      %s1193 = smul.addr %s1192, 8
      %s1194 = scalar_lea.vmem %s4, %s1193
      // Predicated region
      $region37: #{discriminator_block_forward.1} parent=35 // pred_check
        %p1195 = pneg %p147
      $region38: #{discriminator_block_forward.1} parent=35 // pred_check_branch
        %1197 = sbr.rel (%p1195) target = $region40
      $region39: #{discriminator_block_forward.1} parent=35 // pred_region
        %s1198 = smul.u32 9, %s20
      $region40: #{discriminator_block_forward.1} parent=35 // pred_fallthru
        _
    $region36: #{discriminator_block_forward.1} parent=5 // pred_fallthru
      _
    %p1199 = scmp.le.s32.totalorder 2, %s10
    // Predicated region
    $region41: #{discriminator_block_forward.1} parent=5 // pred_check
      %p1200 = pneg %p1199
    $region42: #{discriminator_block_forward.1} parent=5 // pred_check_branch
      %1202 = sbr.rel (%p1200) target = $region44
    $region43: #{discriminator_block_forward.1} parent=5 // pred_region
      %s1203 = ssub.s32 %s10, 2
      // Predicated region
      $region45: #{discriminator_block_forward.1} parent=43 // pred_check
        %p1204 = pneg %p153
      $region46: #{discriminator_block_forward.1} parent=43 // pred_check_branch
        %1206 = sbr.rel (%p1204) target = $region48
      $region47: #{discriminator_block_forward.1} parent=43 // pred_region
        %s1207 = smul.u32 9, %s22
        %p1208 = scmp.lt.s32.totalorder %s21, 1
        %s1209 = scalar_select %p1208, %s21, 1
        %p1210 = scmp.lt.s32.totalorder %s1207, 8
        %s1211 = scalar_select %p1210, %s1207, 8
        %s1212 = smul.addr %s1209, 9
        %s1213 = sadd.s32 %s1211, %s1212
        %s1214 = smul.addr %s1213, 8
        %s1215 = scalar_lea.vmem %s4, %s1214
      $region48: #{discriminator_block_forward.1} parent=43 // pred_fallthru
        _
    $region44: #{discriminator_block_forward.1} parent=5 // pred_fallthru
      _
  $region6: #{discriminator_block_forward.1} parent=0 // loop_footer
    %s14 = sadd.s32 1, %s10
  $region7: #{discriminator_block_forward.1} parent=0 // loop_footer_branch
    %9 = sbr.rel target = $region3
  $region8: #{discriminator_block_forward.1} parent=0 // loop_exit
    _

</llo_original>
